<compile_context>
chip_gen: v5e
topology: v5e:2x2
jax: 0.10.0
libtpu: 0.0.40
codegen_flags: <defaults>
</compile_context>

<pallas_src>
import functools

import jax
import jax.numpy as jnp
from jax.experimental import pallas as pl
from jax.experimental.pallas import tpu as pltpu

_LANES = 128     # vreg lane width
_SUBLANES = 8    # vreg sublane width


def _round_up(x, m):
    return ((x + m - 1) // m) * m


def _linear_kernel(x_ref, w_ref, b_ref, o_ref):
    # x_ref: [tN, C], w_ref: [C, Kp], b_ref: [1, Kp], o_ref: [tN, Kp]
    acc = jnp.dot(x_ref[...], w_ref[...], preferred_element_type=jnp.float32)
    o_ref[...] = (acc + b_ref[...].astype(jnp.float32)).astype(o_ref.dtype)


def prepare_classifier_params(weight, bias):
    """One-time parameter prep (call at load time, NOT per forward).

    weight: [n_classes, n_channels]  (PyTorch nn.Linear layout)
    bias:   [n_classes]
    Returns (w_t [C, Kp], b2d [1, Kp]) with Kp = round_up(n_classes, 128)
    so the kernel's output/weight lane dim is dense (no masked stores).
    """
    k, c = weight.shape
    kp = _round_up(k, _LANES)
    w_t = jnp.zeros((c, kp), weight.dtype).at[:, :k].set(weight.T)
    b2d = jnp.zeros((1, kp), bias.dtype).at[0, :k].set(bias)
    return w_t, b2d


@functools.partial(jax.jit, static_argnames=("n_classes", "block_n"))
def classifier_1fc_forward(x, w_t, b2d, *, n_classes, block_n=512):
    """y = x @ W^T + b.  x: [N, C]; w_t/b2d from prepare_classifier_params."""
    n, c = x.shape
    cw, kp = w_t.shape
    assert cw == c, "weight / input channel mismatch"

    cost = pl.CostEstimate(
        flops=2 * n * c * kp,
        transcendentals=0,
        bytes_accessed=(n * c + c * kp + kp + n * kp) * x.dtype.itemsize,
    )

    if n <= block_n:
        # Single tile: no grid -> zero pipeline bookkeeping for this micro-GEMM.
        np_ = _round_up(n, _SUBLANES)
        xp = x if np_ == n else jnp.pad(x, ((0, np_ - n), (0, 0)))
        yp = pl.pallas_call(
            _linear_kernel,
            out_shape=jax.ShapeDtypeStruct((np_, kp), x.dtype),
            in_specs=[
                pl.BlockSpec(memory_space=pltpu.MemorySpace.VMEM),
                pl.BlockSpec(memory_space=pltpu.MemorySpace.VMEM),
                pl.BlockSpec(memory_space=pltpu.MemorySpace.VMEM),
            ],
            out_specs=pl.BlockSpec(memory_space=pltpu.MemorySpace.VMEM),
            cost_estimate=cost,
        )(xp, w_t, b2d)
    else:
        # Production-batch path: tile N, keep (tiny) W and bias resident.
        # "parallel" lets the megacore / v7x second TensorCore split the batch.
        np_ = _round_up(n, block_n)
        xp = x if np_ == n else jnp.pad(x, ((0, np_ - n), (0, 0)))
        grid = (np_ // block_n,)
        yp = pl.pallas_call(
            _linear_kernel,
            out_shape=jax.ShapeDtypeStruct((np_, kp), x.dtype),
            grid_spec=pltpu.PrefetchScalarGridSpec(
                num_scalar_prefetch=0,
                grid=grid,
                in_specs=[
                    pl.BlockSpec((block_n, c), lambda i: (i, 0)),
                    pl.BlockSpec((c, kp), lambda i: (0, 0)),
                    pl.BlockSpec((1, kp), lambda i: (0, 0)),
                ],
                out_specs=pl.BlockSpec((block_n, kp), lambda i: (i, 0)),
            ),
            compiler_params=pltpu.CompilerParams(
                dimension_semantics=("parallel",),
                vmem_limit_bytes=64 * 1024 * 1024,
            ),
            cost_estimate=cost,
        )(xp, w_t, b2d)

    return yp[:n, :n_classes]


if __name__ == "__main__":
    # Module config: Classifier_1fc(n_channels=32, n_classes=16, droprate=0.0)
    n_channels, n_classes = 32, 16
    batch = 8

    key = jax.random.PRNGKey(0)
    kx, kw, kb, kx2 = jax.random.split(key, 4)

    # nn.Linear default init: U(-1/sqrt(in_features), 1/sqrt(in_features))
    bound = 1.0 / (n_channels ** 0.5)
    weight = jax.random.uniform(kw, (n_classes, n_channels), jnp.float32,
                                minval=-bound, maxval=bound)  # PyTorch layout
    bias = jax.random.uniform(kb, (n_classes,), jnp.float32,
                              minval=-bound, maxval=bound)

    # One-time parameter prep (transpose + lane-dense pad), hoisted out of the
    # forward path.
    w_t, b2d = prepare_classifier_params(weight, bias)

    # --- small-batch (no-grid) path ---
    x = jax.random.normal(kx, (batch, n_channels), jnp.float32)
    y = classifier_1fc_forward(x, w_t, b2d, n_classes=n_classes)
    y = jax.block_until_ready(y)
    y_ref = x @ weight.T + bias
    assert y.shape == (batch, n_classes)
    assert jnp.allclose(y, y_ref, atol=1e-5, rtol=1e-5)

    # --- tiled (grid) path: non-multiple batch exercises padding + N tiling ---
    big_batch = 600
    x2 = jax.random.normal(kx2, (big_batch, n_channels), jnp.float32)
    y2 = classifier_1fc_forward(x2, w_t, b2d, n_classes=n_classes, block_n=256)
    y2 = jax.block_until_ready(y2)
    y2_ref = x2 @ weight.T + bias
    assert y2.shape == (big_batch, n_classes)
    assert jnp.allclose(y2, y2_ref, atol=1e-5, rtol=1e-5)

    # droprate == 0.0 -> dropout branch omitted (identity).
    print("KERNEL_OK")
</pallas_src>

<mosaic_0001>
module attributes {stable_mosaic.version = 11 : i64} {
  func.func @_linear_kernel(%arg0: memref<8x32xf32, #tpu.memory_space<vmem>>, %arg1: memref<32x128xf32, #tpu.memory_space<vmem>>, %arg2: memref<1x128xf32, #tpu.memory_space<vmem>>, %arg3: memref<8x128xf32, #tpu.memory_space<vmem>>) attributes {dimension_semantics = [], scalar_prefetch = 0 : i64, scratch_operands = 0 : i64, tpu.core_type = #tpu.core_type<tc>} {
    %c0 = arith.constant 0 : index
    %c0_0 = arith.constant 0 : index
    %0 = vector.load %arg0[%c0, %c0_0] : memref<8x32xf32, #tpu.memory_space<vmem>>, vector<8x32xf32>
    %c0_1 = arith.constant 0 : index
    %c0_2 = arith.constant 0 : index
    %1 = vector.load %arg1[%c0_1, %c0_2] : memref<32x128xf32, #tpu.memory_space<vmem>>, vector<32x128xf32>
    %cst = arith.constant dense<0.000000e+00> : vector<8x128xf32>
    %2 = tpu.matmul %0, %1, %cst {dimension_numbers = #tpu.dot_dimension_numbers<[1], [0], [0], [1], [0, 0, 1, 1], [], []>} : vector<8x32xf32>, vector<32x128xf32>, vector<8x128xf32> -> vector<8x128xf32>
    %c0_3 = arith.constant 0 : index
    %c0_4 = arith.constant 0 : index
    %3 = vector.load %arg2[%c0_3, %c0_4] : memref<1x128xf32, #tpu.memory_space<vmem>>, vector<1x128xf32>
    %4 = vector.broadcast %3 : vector<1x128xf32> to vector<8x128xf32>
    %5 = arith.addf %2, %4 : vector<8x128xf32>
    %c0_5 = arith.constant 0 : index
    %c0_6 = arith.constant 0 : index
    %6 = vector.load %arg3[%c0_5, %c0_6] : memref<8x128xf32, #tpu.memory_space<vmem>>, vector<8x128xf32>
    tpu.vector_store %arg3[%c0_5, %c0_6], %5 {strides = array<i32>} : memref<8x128xf32, #tpu.memory_space<vmem>>, vector<8x128xf32>,
    return
  }
}

</mosaic_0001>

<llo_original>
// kernel: classifier_1fc_forward.1
$region0: #{classifier_1fc_forward.1}
  #allocation0 [shape = 'u32[]', space=smem, size = 0x4, offset = 0x4, fixed_abs, tag = 'smem constant byte address 0x4 - core index']
  #allocation1 [shape = 'u32[72,128]{1,0:T(1,128)}', space=vmem, size = 0x9000, scoped, tag = 'internal scratch']
  %s0 = inlined_call_operand.hbm [shape: f32[8,32], index: 0, kind: input, shape index: {}]
  %s1 = inlined_call_operand.hbm [shape: f32[32,128], index: 1, kind: input, shape index: {}]
  %s2 = inlined_call_operand.vmem [shape: f32[1,128], index: 2, kind: input, shape index: {}]
  %s3 = inlined_call_operand.hbm [shape: f32[8,128], index: 3, kind: output, shape index: {}]
  %s4 = sld [smem:[#allocation0]]
  $region30: #{classifier_1fc_forward.1} parent=0
    _
  %s6 = ssub.s32 1, %s4
  %s7 = scalar_select 0, %s6, %s4
  $region1: #{classifier_1fc_forward.1} parent=0
    #allocation2 [shape = 'u8[4096]{0}', space=vmem, size = 0x1000, scoped, tag = 'input window, operand 0, single buffered']
    #allocation3 [shape = 's32[1]{0}', space=sflag, size = 0x4, scoped, tag = 'scoped memory for classifier_1fc_forward.1']
    #allocation4 [shape = 's32[1]{0}', space=sflag, size = 0x4, scoped, tag = 'scoped memory for classifier_1fc_forward.1']
    #allocation5 [shape = 'u8[16384]{0}', space=vmem, size = 0x4000, scoped, tag = 'input window, operand 1, single buffered']
    #allocation6 [shape = 's32[1]{0}', space=sflag, size = 0x4, scoped, tag = 'scoped memory for classifier_1fc_forward.1']
    #allocation7 [shape = 'u8[4096]{0}', space=vmem, size = 0x1000, scoped, tag = 'output window, operand 0, single buffered']
    %8 = vsyncpa [#allocation3], 0
    %9 = vsyncpa [#allocation6], 0
    %10 = vsyncpa [#allocation4], 0
    // Predicated region
    $region2: #{classifier_1fc_forward.1} parent=1 // pred_check
      _
    $region3: #{classifier_1fc_forward.1} parent=1 // pred_check_branch
      %12 = sbr.rel (0) target = $region5
    $region4: #{classifier_1fc_forward.1} parent=1 // pred_region
      %14 = vsyncadd [#allocation3], 0
      %s16 = sshll.u32 %s0, 4
      %s17 = int_to_ptr.hbm [resolvable:$true] %s16
      %s18 = sshll.u32 [#allocation2], 4
      %s19 = int_to_ptr.vmem [resolvable:$true] %s18
      %21 = dma.hbm_to_vmem [thread:$0]  %s17, 128, %s19, [#allocation3]
    $region5: #{classifier_1fc_forward.1} parent=1 // pred_fallthru
      _
    // Predicated region
    $region6: #{classifier_1fc_forward.1} parent=1 // pred_check
      _
    $region7: #{classifier_1fc_forward.1} parent=1 // pred_check_branch
      %23 = sbr.rel (0) target = $region9
    $region8: #{classifier_1fc_forward.1} parent=1 // pred_region
      %25 = vsyncadd [#allocation6], 0
      %s26 = sshll.u32 %s1, 4
      %s27 = int_to_ptr.hbm [resolvable:$true] %s26
      %s28 = sshll.u32 [#allocation5], 4
      %s29 = int_to_ptr.vmem [resolvable:$true] %s28
      %34 = dma.hbm_to_vmem [thread:$0]  %s27, 512, %s29, [#allocation6], 128, 128, 8
    $region9: #{classifier_1fc_forward.1} parent=1 // pred_fallthru
      _
    // Predicated region
    $region10: #{classifier_1fc_forward.1} parent=1 // pred_check
      _
    $region11: #{classifier_1fc_forward.1} parent=1 // pred_check_branch
      %36 = sbr.rel (0) target = $region13
    $region12: #{classifier_1fc_forward.1} parent=1 // pred_region
      _
    $region13: #{classifier_1fc_forward.1} parent=1 // pred_fallthru
      _
    // Predicated region
    $region14: #{classifier_1fc_forward.1} parent=1 // pred_check
      _
    $region15: #{classifier_1fc_forward.1} parent=1 // pred_check_branch
      %38 = sbr.rel (0) target = $region17
    $region16: #{classifier_1fc_forward.1} parent=1 // pred_region
      %40 = dma.done [#allocation3], 128
    $region17: #{classifier_1fc_forward.1} parent=1 // pred_fallthru
      _
    // Predicated region
    $region18: #{classifier_1fc_forward.1} parent=1 // pred_check
      _
    $region19: #{classifier_1fc_forward.1} parent=1 // pred_check_branch
      %42 = sbr.rel (0) target = $region21
    $region20: #{classifier_1fc_forward.1} parent=1 // pred_region
      %44 = dma.done [#allocation6], 512
    $region21: #{classifier_1fc_forward.1} parent=1 // pred_fallthru
      _
    %v45 = vld [vmem:[#allocation2] sm:$0xff]
    %v46 = vld [vmem:[#allocation5] sm:$0xff]
    %v47 = vld [vmem:[#allocation5 + $0x8] sm:$0xff]
    %v48 = vld [vmem:[#allocation5 + $0x10] sm:$0xff]
    %v49 = vld [vmem:[#allocation5 + $0x18] sm:$0xff]
    %v50 = vld [vmem:[%s2] sm:$0x1]
    %v52 = vperm.slane %v50, 0
    %vm54 = vcmask 261120
    %v56 = vsel %vm54, %v45, 0
    %58 = vmatpush.msra.mxu0 0.0
    %59 = vmatpush.msra.mxu0 0.0
    %60 = vmatpush.msra.mxu0 0.0
    %61 = vmatpush.msra.mxu0 0.0
    %62 = vmatpush.msra.mxu0 0.0
    %63 = vmatpush.msra.mxu0 0.0
    %64 = vmatpush.msra.mxu0 0.0
    %65 = vmatpush.msra.mxu0 0.0
    %66 = vmatpush.msra.mxu0 0.0
    %67 = vmatpush.msra.mxu0 0.0
    %68 = vmatpush.msra.mxu0 0.0
    %69 = vmatpush.msra.mxu0 0.0
    %70 = vmatpush.msra.mxu0 %v49
    %71 = vmatpush.msra.mxu0 %v48
    %72 = vmatpush.msra.mxu0 %v47
    %73 = vmatpush.msra.mxu0 %v46
    %74 = vmatmul.f32.gmra.mxu0 %v56
    %v75 = vpop.f32.mrf.mxu0
    %v76 = vadd.f32 %v52, %v75
    %77 = vdwg.mxu0
    %78 = vst [vmem:[#allocation7] sm:$0xff] %v76
    // Predicated region
    $region22: #{classifier_1fc_forward.1} parent=1 // pred_check
      _
    $region23: #{classifier_1fc_forward.1} parent=1 // pred_check_branch
      %80 = sbr.rel (0) target = $region25
    $region24: #{classifier_1fc_forward.1} parent=1 // pred_region
      %82 = vsyncadd [#allocation4], 0
      %s84 = sshll.u32 [#allocation7], 4
      %s85 = int_to_ptr.vmem [resolvable:$true] %s84
      %s86 = sshll.u32 %s3, 4
      %s87 = int_to_ptr.hbm [resolvable:$true] %s86
      %89 = dma.vmem_to_hbm [thread:$0]  %s85, 128, %s87, [#allocation4]
    $region25: #{classifier_1fc_forward.1} parent=1 // pred_fallthru
      _
    // Predicated region
    $region26: #{classifier_1fc_forward.1} parent=1 // pred_check
      _
    $region27: #{classifier_1fc_forward.1} parent=1 // pred_check_branch
      %91 = sbr.rel (0) target = $region29
    $region28: #{classifier_1fc_forward.1} parent=1 // pred_region
      %93 = dma.done [#allocation4], 128
    $region29: #{classifier_1fc_forward.1} parent=1 // pred_fallthru
      _
    %94 = vsyncpa [#allocation3], 1
    %95 = vsyncpa [#allocation6], 1
    %96 = vsyncpa [#allocation4], 1

</llo_original>
